<compile_context>
chip_gen: v5e
topology: v5e:2x2
jax: 0.10.0
libtpu: 0.0.40
codegen_flags: <defaults>
</compile_context>

<pallas_src>
import functools

import jax
import jax.numpy as jnp
from jax.experimental import pallas as pl
from jax.experimental.pallas import tpu as pltpu


# --------------------------------------------------------------------------
# Kernel
# --------------------------------------------------------------------------
def _rmsnorm_kernel(x_ref, w_ref, o_ref, *, eps: float):
    # x_ref: (TR, D), w_ref: (1, D) f32, o_ref: (TR, D)
    # All math in f32 (mean-of-squares accumulation AND the final scale);
    # exactly one cast at the store.  The extra f32 VALU work rides in slack
    # slots of an HBM-bound kernel, so it is free on every generation.
    xf = x_ref[...].astype(jnp.float32)
    w = w_ref[...]                                   # already f32
    ms = jnp.mean(xf * xf, axis=-1, keepdims=True)   # (TR, 1) f32
    norm = jax.lax.rsqrt(ms + eps)                   # (TR, 1) f32 (EUP)
    o_ref[...] = (xf * norm * w).astype(o_ref.dtype)


# --------------------------------------------------------------------------
# Sizing helpers
# --------------------------------------------------------------------------
def _vmem_capacity_bytes() -> int:
    """Physical per-TensorCore VMEM; conservative (v7x-safe) fallback."""
    try:
        cap = int(pltpu.get_tpu_info().vmem_capacity_bytes)
        if cap > 0:
            return cap
    except Exception:
        pass
    # Smallest per-TC VMEM across supported generations (v7x: 64 MiB).
    return 64 * 1024 * 1024


def _vmem_budget_bytes() -> int:
    """Scoped VMEM limit: half of physical, in [32 MiB, 64 MiB].

    v5e/v6e (128 MiB physical) -> 64 MiB (their 16/32 MiB defaults are too
    small for the big row blocks that reach ~85% of HBM roofline).
    v7x (64 MiB physical)      -> 32 MiB, leaving headroom for compiler
    scratch and the 2-deep in/out double buffers.
    """
    cap = _vmem_capacity_bytes()
    return int(max(32 * 1024 * 1024, min(cap // 2, 64 * 1024 * 1024)))


def _num_tensorcores() -> int:
    """TensorCores that a 'parallel' grid axis can be sharded across."""
    try:
        kind = jax.devices()[0].device_kind.lower()
    except Exception:
        return 1
    # v4/v5p (megacore) and v7x expose 2 TensorCores per device.
    if any(tag in kind for tag in ("v4", "v5p", "v7")):
        return 2
    return 1


def _pick_tile_rows(rows: int, dim: int, dtype, vmem_budget: int,
                    num_cores: int) -> int:
    itemsize = jnp.dtype(dtype).itemsize
    # Sublane packing: 8 rows for 32-bit, 16 for 16-bit, 32 for 8-bit dtypes.
    pack = 8 * max(1, 4 // itemsize)
    rows_rounded = ((rows + pack - 1) // pack) * pack

    # VMEM cap: double-buffered input + output blocks (native dtype) plus
    # ~4 f32 temporaries per element for the f32 math path.
    bytes_per_row = dim * (4 * itemsize + 4 * 4)
    vmem_cap_rows = int(vmem_budget * 0.7) // max(bytes_per_row, 1)

    # Byte-based block target (~8 MiB of input per grid step) rather than a
    # fixed row cap: amortizes the ~0.35 us fixed step cost to <1% even for
    # small hidden sizes, on all generations.
    target_block_bytes = 8 * 1024 * 1024
    target_rows = max(target_block_bytes // max(dim * itemsize, 1), pack)

    tile = min(vmem_cap_rows, target_rows)

    # Occupancy guard: on multi-TC chips make sure the parallel grid has at
    # least one (ideally 2+) blocks per TensorCore.  On 1-TC chips keep the
    # single biggest block that fits (grid is a serial loop there).
    if num_cores > 1 and rows_rounded >= num_cores * pack:
        blocks_goal = (2 * num_cores
                       if rows_rounded >= 2 * num_cores * pack
                       else num_cores)
        cap_rows = (rows_rounded // blocks_goal // pack) * pack
        tile = min(tile, max(cap_rows, pack))

    tile = (tile // pack) * pack
    tile = max(tile, pack)
    return int(min(tile, rows_rounded))


# --------------------------------------------------------------------------
# Wrapper
# --------------------------------------------------------------------------
def rmsnorm(x, weight, eps: float = 1e-5, *, tile_rows: int | None = None):
    """RMSNorm over the last axis of x: x * rsqrt(mean(x^2, -1) + eps) * w."""
    orig_shape = x.shape
    dim = orig_shape[-1]
    assert weight.shape == (dim,)

    # TODO(synk): if dim is not a multiple of 128 (esp. dim < 128), stores are
    # lane-masked; a specialized small-D path packing rows into 128 lanes with
    # a segmented reduction would recover the wasted lane/DMA bandwidth.

    x2d = x.reshape(-1, dim)
    rows = x2d.shape[0]

    vmem_limit = _vmem_budget_bytes()
    num_cores = _num_tensorcores()
    if tile_rows is None:
        tile_rows = _pick_tile_rows(rows, dim, x.dtype, vmem_limit, num_cores)

    # Weight pre-cast to f32 once; it stays VMEM-resident across the grid.
    w2d = weight.astype(jnp.float32).reshape(1, dim)

    itemsize = jnp.dtype(x.dtype).itemsize
    grid = (pl.cdiv(rows, tile_rows),)   # no host padding; Pallas masks the tail

    out = pl.pallas_call(
        functools.partial(_rmsnorm_kernel, eps=eps),
        out_shape=jax.ShapeDtypeStruct((rows, dim), x.dtype),
        grid_spec=pltpu.PrefetchScalarGridSpec(
            num_scalar_prefetch=0,
            grid=grid,
            in_specs=[
                pl.BlockSpec((tile_rows, dim), lambda i: (i, 0)),
                pl.BlockSpec((1, dim), lambda i: (0, 0)),
            ],
            out_specs=pl.BlockSpec((tile_rows, dim), lambda i: (i, 0)),
        ),
        compiler_params=pltpu.CompilerParams(
            dimension_semantics=("parallel",),
            vmem_limit_bytes=vmem_limit,
        ),
        cost_estimate=pl.CostEstimate(
            flops=4 * rows * dim,
            transcendentals=rows,
            bytes_accessed=2 * rows * dim * itemsize + dim * 4,
        ),
    )(x2d, w2d)

    return out.reshape(orig_shape)


def rmsnorm_ref(x, weight, eps: float = 1e-5):
    xf = x.astype(jnp.float32)
    norm = jax.lax.rsqrt(jnp.mean(xf * xf, axis=-1, keepdims=True) + eps)
    return (xf * norm * weight.astype(jnp.float32)).astype(x.dtype)


# --------------------------------------------------------------------------
# Self-test
# --------------------------------------------------------------------------
if __name__ == "__main__":
    key = jax.random.PRNGKey(0)
    batch, seq, hidden = 2, 8, 128

    x = jax.random.normal(key, (batch, seq, hidden), dtype=jnp.float32)
    # The module initializes weight to ones(dim); use a non-trivial weight to
    # exercise the scale path while staying deterministic.
    weight = jnp.ones((hidden,), dtype=jnp.float32)

    out = jax.block_until_ready(rmsnorm(x, weight, eps=1e-5))
    ref = rmsnorm_ref(x, weight, eps=1e-5)
    assert out.shape == x.shape and out.dtype == x.dtype
    assert jnp.allclose(out, ref, atol=1e-5, rtol=1e-5)

    # Partial last block (rows not divisible by the tile), still f32.
    x2 = jax.random.normal(jax.random.PRNGKey(1), (3, 37, hidden), dtype=jnp.float32)
    out2 = jax.block_until_ready(rmsnorm(x2, weight, eps=1e-5))
    assert jnp.allclose(out2, rmsnorm_ref(x2, weight, eps=1e-5),
                        atol=1e-5, rtol=1e-5)

    # bf16 path: math is done in f32 with a single cast at the store, so it
    # should track the f32-accumulated reference closely.
    xb = jax.random.normal(jax.random.PRNGKey(2), (4, 16, hidden),
                           dtype=jnp.bfloat16)
    wb = (1.0 + 0.1 * jax.random.normal(jax.random.PRNGKey(3), (hidden,),
                                        dtype=jnp.float32))
    outb = jax.block_until_ready(rmsnorm(xb, wb, eps=1e-5))
    refb = rmsnorm_ref(xb, wb, eps=1e-5)
    assert outb.dtype == jnp.bfloat16
    assert jnp.allclose(outb.astype(jnp.float32), refb.astype(jnp.float32),
                        atol=2e-2, rtol=2e-2)

    print("KERNEL_OK")
</pallas_src>

<mosaic_0001>
module attributes {stable_mosaic.version = 11 : i64} {
  func.func @_rmsnorm_kernel(%arg0: i32, %arg1: memref<16x128xf32, #tpu.memory_space<vmem>>, %arg2: memref<1x128xf32, #tpu.memory_space<vmem>>, %arg3: memref<16x128xf32, #tpu.memory_space<vmem>>) attributes {dimension_semantics = [#tpu.dimension_semantics<parallel>], iteration_bounds = array<i64: 1>, scalar_prefetch = 0 : i64, scratch_operands = 0 : i64, tpu.core_type = #tpu.core_type<tc>, window_params = [{transform_indices = @transform_0, window_bounds = array<i64: 16, 128>}, {pipeline_mode = #tpu.pipeline_mode<synchronous>, transform_indices = @transform_1, window_bounds = array<i64: 1, 128>}, {transform_indices = @transform_2, window_bounds = array<i64: 16, 128>}]} {
    %c0 = arith.constant 0 : index
    %c0_0 = arith.constant 0 : index
    %0 = vector.load %arg1[%c0, %c0_0] : memref<16x128xf32, #tpu.memory_space<vmem>>, vector<16x128xf32>
    %c0_1 = arith.constant 0 : index
    %c0_2 = arith.constant 0 : index
    %1 = vector.load %arg2[%c0_1, %c0_2] : memref<1x128xf32, #tpu.memory_space<vmem>>, vector<1x128xf32>
    %2 = arith.mulf %0, %0 : vector<16x128xf32>
    %cst = arith.constant dense<0.000000e+00> : vector<16xf32>
    %3 = vector.multi_reduction <add>, %2, %cst [1] : vector<16x128xf32> to vector<16xf32>
    %4 = vector.shape_cast %3 : vector<16xf32> to vector<16x1xf32>
    %cst_3 = arith.constant 1.280000e+02 : f32
    %5 = vector.broadcast %cst_3 : f32 to vector<16x1xf32>
    %6 = arith.divf %4, %5 : vector<16x1xf32>
    %cst_4 = arith.constant 9.99999974E-6 : f32
    %7 = vector.broadcast %cst_4 : f32 to vector<16x1xf32>
    %8 = arith.addf %6, %7 : vector<16x1xf32>
    %9 = math.rsqrt %8 : vector<16x1xf32>
    %10 = vector.broadcast %9 : vector<16x1xf32> to vector<16x128xf32>
    %11 = arith.mulf %0, %10 : vector<16x128xf32>
    %12 = vector.broadcast %1 : vector<1x128xf32> to vector<16x128xf32>
    %13 = arith.mulf %11, %12 : vector<16x128xf32>
    %c0_5 = arith.constant 0 : index
    %c0_6 = arith.constant 0 : index
    %14 = vector.load %arg3[%c0_5, %c0_6] : memref<16x128xf32, #tpu.memory_space<vmem>>, vector<16x128xf32>
    tpu.vector_store %arg3[%c0_5, %c0_6], %13 {strides = array<i32>} : memref<16x128xf32, #tpu.memory_space<vmem>>, vector<16x128xf32>,
    return
  }
  func.func @transform_0(%arg0: i32) -> (i32, i32) {
    %c0_i32 = arith.constant 0 : i32
    %c0_i32_0 = arith.constant 0 : i32
    return %arg0, %c0_i32 : i32, i32
  }
  func.func @transform_1(%arg0: i32) -> (i32, i32) {
    %c0_i32 = arith.constant 0 : i32
    %c0_i32_0 = arith.constant 0 : i32
    %c0_i32_1 = arith.constant 0 : i32
    return %c0_i32, %c0_i32_0 : i32, i32
  }
  func.func @transform_2(%arg0: i32) -> (i32, i32) {
    %c0_i32 = arith.constant 0 : i32
    %c0_i32_0 = arith.constant 0 : i32
    return %arg0, %c0_i32 : i32, i32
  }
}

</mosaic_0001>

<llo_original>
// kernel: tpu_custom_call.1
$region0: #{tpu_custom_call.1}
  #allocation0 [shape = 'u32[]', space=smem, size = 0x4, offset = 0x4, fixed_abs, tag = 'smem constant byte address 0x4 - core index']
  #allocation1 [shape = 'u32[72,128]{1,0:T(1,128)}', space=vmem, size = 0x9000, scoped, tag = 'internal scratch']
  %s0 = inlined_call_operand.hbm [shape: f32[16,128], index: 0, kind: input, shape index: {}]
  %s1 = inlined_call_operand.hbm [shape: f32[1,128], index: 1, kind: input, shape index: {}]
  %s2 = inlined_call_operand.hbm [shape: f32[16,128], index: 2, kind: output, shape index: {}]
  %s3 = sld [smem:[#allocation0]]
  $region26: #{tpu_custom_call.1} parent=0
    _
  %s5 = ssub.s32 1, %s3
  %s6 = scalar_select 0, %s5, %s3
  $region1: #{tpu_custom_call.1} parent=0
    #allocation2 [shape = 'u8[8192]{0}', space=vmem, size = 0x2000, scoped, tag = 'input window, operand 0, single buffered']
    #allocation3 [shape = 's32[1]{0}', space=sflag, size = 0x4, scoped, tag = 'scoped memory for tpu_custom_call.1']
    #allocation4 [shape = 's32[1]{0}', space=sflag, size = 0x4, scoped, tag = 'scoped memory for tpu_custom_call.1']
    #allocation5 [shape = 'u8[512]{0}', space=vmem, size = 0x400, scoped, tag = 'input window, operand 1, single buffered']
    #allocation6 [shape = 's32[1]{0}', space=sflag, size = 0x4, scoped, tag = 'scoped memory for tpu_custom_call.1']
    #allocation7 [shape = 'u8[8192]{0}', space=vmem, size = 0x2000, scoped, tag = 'output window, operand 0, single buffered']
    %7 = vsyncpa [#allocation3], 0
    %8 = vsyncpa [#allocation6], 0
    %9 = vsyncpa [#allocation4], 0
    // Predicated region
    $region2: #{tpu_custom_call.1} parent=1 // pred_check
      _
    $region3: #{tpu_custom_call.1} parent=1 // pred_check_branch
      %11 = sbr.rel (0) target = $region5
    $region4: #{tpu_custom_call.1} parent=1 // pred_region
      %13 = vsyncadd [#allocation3], 0
      %s14 = sshll.u32 %s0, 4
      %s15 = int_to_ptr.hbm [resolvable:$true] %s14
      %s16 = sshll.u32 [#allocation2], 4
      %s17 = int_to_ptr.vmem [resolvable:$true] %s16
      %22 = dma.hbm_to_vmem [thread:$0]  %s15, 256, %s17, [#allocation3], 128, 128, 8
    $region5: #{tpu_custom_call.1} parent=1 // pred_fallthru
      _
    // Predicated region
    $region6: #{tpu_custom_call.1} parent=1 // pred_check
      _
    $region7: #{tpu_custom_call.1} parent=1 // pred_check_branch
      %24 = sbr.rel (0) target = $region9
    $region8: #{tpu_custom_call.1} parent=1 // pred_region
      %26 = vsyncadd [#allocation6], 0
      %s28 = sshll.u32 %s1, 4
      %s29 = int_to_ptr.hbm [resolvable:$true] %s28
      %s30 = sshll.u32 [#allocation5], 4
      %s31 = int_to_ptr.vmem [resolvable:$true] %s30
      %33 = dma.hbm_to_vmem [thread:$0]  %s29, 16, %s31, [#allocation6]
    $region9: #{tpu_custom_call.1} parent=1 // pred_fallthru
      _
    // Predicated region
    $region10: #{tpu_custom_call.1} parent=1 // pred_check
      _
    $region11: #{tpu_custom_call.1} parent=1 // pred_check_branch
      %35 = sbr.rel (0) target = $region13
    $region12: #{tpu_custom_call.1} parent=1 // pred_region
      %37 = dma.done [#allocation3], 256
    $region13: #{tpu_custom_call.1} parent=1 // pred_fallthru
      _
    // Predicated region
    $region14: #{tpu_custom_call.1} parent=1 // pred_check
      _
    $region15: #{tpu_custom_call.1} parent=1 // pred_check_branch
      %39 = sbr.rel (0) target = $region17
    $region16: #{tpu_custom_call.1} parent=1 // pred_region
      %41 = dma.done [#allocation6], 16
    $region17: #{tpu_custom_call.1} parent=1 // pred_fallthru
      _
    %v42 = vld [vmem:[#allocation2] sm:$0xff]
    %v43 = vld [vmem:[#allocation2 + $0x8] sm:$0xff]
    %v44 = vld [vmem:[#allocation5] sm:$0x1]
    %v45 = vmul.f32 %v42, %v42
    %v46 = vmul.f32 %v43, %v43
    %47 = vadd.xlane.f32.xlu0 %v45
    %v48 = vpop.xlane.xlu0 %47
    %49 = vadd.xlane.f32.xlu0 %v46
    %v50 = vpop.xlane.xlu0 %49
    %v51 = vrcp.pop 128.0
    %v52 = vmul.f32 128.0, %v51
    %v53 = vsub.f32 1.0, %v52
    %v54 = vmul.f32 %v51, %v53
    %v55 = vadd.f32 %v51, %v54
    %vm56 = vweird.f32 %v51
    %v57 = vsel %vm56, %v51, %v55
    %v58 = vmul.f32 %v48, %v57
    %v59 = vmul.f32 %v50, %v57
    %v60 = vadd.f32 %v58, 1e-05
    %v61 = vadd.f32 %v59, 1e-05
    %v62 = vrsqrt.pop %v60
    %v63 = vmul.f32 %v62, %v60
    %v64 = vmul.f32 %v63, %v62
    %v65 = vmul.f32 0.5, %v64
    %v66 = vsub.f32 1.5, %v65
    %v67 = vmul.f32 %v62, %v66
    %vm68 = vweird.f32 %v60
    %vm69 = vweird.f32 %v62
    %vm70 = vmor %vm68, %vm69
    %v71 = vsel %vm70, %v62, %v67
    %v72 = vrsqrt.pop %v61
    %v73 = vmul.f32 %v72, %v61
    %v74 = vmul.f32 %v73, %v72
    %v75 = vmul.f32 0.5, %v74
    %v76 = vsub.f32 1.5, %v75
    %v77 = vmul.f32 %v72, %v76
    %vm78 = vweird.f32 %v61
    %vm79 = vweird.f32 %v72
    %vm80 = vmor %vm78, %vm79
    %v81 = vsel %vm80, %v72, %v77
    %v82 = vmul.f32 %v42, %v71
    %v83 = vmul.f32 %v43, %v81
    %v85 = vperm.slane %v44, 0
    %v87 = vmul.f32 %v82, %v85
    %v88 = vmul.f32 %v83, %v85
    %89 = vst [vmem:[#allocation7] sm:$0xff] %v87
    %90 = vst [vmem:[#allocation7 + $0x8] sm:$0xff] %v88
    // Predicated region
    $region18: #{tpu_custom_call.1} parent=1 // pred_check
      _
    $region19: #{tpu_custom_call.1} parent=1 // pred_check_branch
      %92 = sbr.rel (0) target = $region21
    $region20: #{tpu_custom_call.1} parent=1 // pred_region
      %94 = vsyncadd [#allocation4], 0
      %s95 = sshll.u32 [#allocation7], 4
      %s96 = int_to_ptr.vmem [resolvable:$true] %s95
      %s97 = sshll.u32 %s2, 4
      %s98 = int_to_ptr.hbm [resolvable:$true] %s97
      %103 = dma.vmem_to_hbm [thread:$0]  %s96, 256, %s98, [#allocation4], 128, 128, 8
    $region21: #{tpu_custom_call.1} parent=1 // pred_fallthru
      _
    // Predicated region
    $region22: #{tpu_custom_call.1} parent=1 // pred_check
      _
    $region23: #{tpu_custom_call.1} parent=1 // pred_check_branch
      %105 = sbr.rel (0) target = $region25
    $region24: #{tpu_custom_call.1} parent=1 // pred_region
      %107 = dma.done [#allocation4], 256
    $region25: #{tpu_custom_call.1} parent=1 // pred_fallthru
      _
    %108 = vsyncpa [#allocation3], 1
    %109 = vsyncpa [#allocation6], 1
    %110 = vsyncpa [#allocation4], 1

</llo_original>
